<compile_context>
chip_gen: v7x
topology: tpu7x:2x2x1
jax: 0.10.0
libtpu: 0.0.40
codegen_flags: <defaults>
</compile_context>

<pallas_src>
import random

import jax
import jax.numpy as jnp
from jax.experimental import pallas as pl
from jax.experimental.pallas import tpu as pltpu

_LANE = 128            # TPU vreg lane width.
_MAX_ROW_TILE = 1024   # rows per block.
_MAX_TILE_W = 512      # lanes per block (4 x 128).


# ----------------------------------------------------------------------------
# Tiling helpers
# ----------------------------------------------------------------------------
def _pick_tile_w(width: int):
    """Largest multiple of 128 that divides `width`, capped at _MAX_TILE_W."""
    for k in (4, 3, 2, 1):                      # 512, 384, 256, 128 lanes
        tw = k * _LANE
        if tw <= _MAX_TILE_W and width % tw == 0:
            return tw
    return None                                  # width not 128-aligned


def _rev_matmul_width(tile_w: int) -> int:
    """Anti-identity width: 256 on v6e/v7x (2x256x256 MXU), 128 on v5e/older.

    Either choice is correct on every chip; this is a perf-only decision and
    the kernel stays HBM-bound in both cases.
    """
    try:
        kind = jax.devices()[0].device_kind.lower()
    except Exception:  # pragma: no cover - defensive only
        kind = ""
    small_mxu = any(t in kind for t in ("v2", "v3", "v4", "v5"))
    rev_w = 128 if small_mxu else 256
    return rev_w if tile_w % rev_w == 0 else 128


# ----------------------------------------------------------------------------
# Pallas kernel: mirrored wide block + in-block lane reversal via MXU matmul
# ----------------------------------------------------------------------------
def _make_hflip_kernel(tile_w: int, rev_w: int, dtype):
    n_sub = tile_w // rev_w
    is_int = bool(jnp.issubdtype(dtype, jnp.integer))

    def kernel(x_ref, o_ref):
        # x_ref / o_ref: (tm, tile_w) in the ORIGINAL dtype (narrow dtypes are
        # DMA'd directly; all casts happen in vregs below).
        #
        # (rev_w, rev_w) anti-identity generated on the VPU each grid step:
        # cheaper than an HBM operand + double-buffered VMEM slot, and has no
        # "init on first grid step" hazard when the grid is split across cores.
        r = jax.lax.broadcasted_iota(jnp.int32, (rev_w, rev_w), 0)
        c = jax.lax.broadcasted_iota(jnp.int32, (rev_w, rev_w), 1)
        rev = (r + c == rev_w - 1).astype(jnp.float32)

        for k in range(n_sub):                   # unrolled; n_sub <= 4
            blk = x_ref[:, k * rev_w:(k + 1) * rev_w].astype(jnp.float32)
            # out[:, t] = blk[:, rev_w - 1 - t].  HIGHEST precision keeps the
            # x * 1.0 products bit-exact in f32: the flip is lossless.
            flipped = jnp.dot(blk, rev,
                              preferred_element_type=jnp.float32,
                              precision=jax.lax.Precision.HIGHEST)
            if is_int:
                # TODO(synk): integer values with |v| > 2^24 are not exactly
                #             representable in f32; fine for uint8/uint16 images.
                flipped = jnp.round(flipped).astype(jnp.int32)
            dst = (n_sub - 1 - k) * rev_w        # mirrored sub-block position
            o_ref[:, dst:dst + rev_w] = flipped.astype(o_ref.dtype)

    return kernel


def _hflip_2d_pallas(x2d: jax.Array, tile_w: int) -> jax.Array:
    """Reverse the last axis of a 2-D (rows, W) array; requires W % tile_w == 0."""
    M, W = x2d.shape
    assert W % tile_w == 0, (W, tile_w)
    n_wblk = W // tile_w
    rev_w = _rev_matmul_width(tile_w)

    tm = min(M, _MAX_ROW_TILE)                   # full dim when small, else 1024
    # Megacore (v7x has 2 TensorCores): keep >=2 grid steps on a parallel axis
    # when everything would otherwise fit in a single tile.
    if pl.cdiv(M, tm) * n_wblk == 1:
        half = ((M // 2 + 31) // 32) * 32        # multiple of 32 -> any dtype OK
        if 0 < half < M:
            tm = half
    grid = (pl.cdiv(M, tm), n_wblk)

    itemsize = jnp.dtype(x2d.dtype).itemsize
    cost = pl.CostEstimate(
        flops=2 * M * W * rev_w,
        transcendentals=0,
        bytes_accessed=int(2 * M * W * itemsize),
    )

    return pl.pallas_call(
        _make_hflip_kernel(tile_w, rev_w, x2d.dtype),
        out_shape=jax.ShapeDtypeStruct((M, W), x2d.dtype),
        grid_spec=pltpu.PrefetchScalarGridSpec(
            num_scalar_prefetch=0,
            grid=grid,
            in_specs=[pl.BlockSpec((tm, tile_w), lambda i, j: (i, j))],
            # width block j of the input lands at the mirrored block n_wblk-1-j.
            out_specs=pl.BlockSpec((tm, tile_w),
                                   lambda i, j: (i, n_wblk - 1 - j)),
        ),
        compiler_params=pltpu.CompilerParams(
            dimension_semantics=("parallel", "parallel")),
        cost_estimate=cost,
    )(x2d)


# ----------------------------------------------------------------------------
# func.hflip equivalent (any leading dims: HW, CHW, NCHW, ...; float or int)
# ----------------------------------------------------------------------------
def hflip_image_pallas(image: jax.Array) -> jax.Array:
    orig_shape = image.shape
    W = orig_shape[-1]
    x2d = image.reshape(-1, W)                   # fold N/C/H into the row axis

    tile_w = _pick_tile_w(W)
    if tile_w is not None:
        y2d = _hflip_2d_pallas(x2d, tile_w)
    else:
        # TODO(synk): handle W % 128 != 0 inside the kernel (shifted reversal
        #             with a carried neighbour block) instead of this
        #             pad + slice round trip through HBM.
        pad = (-W) % _LANE
        xp = jnp.pad(x2d, ((0, 0), (pad, 0)))    # left-pad: flip lands in [0, W)
        y2d = _hflip_2d_pallas(xp, _pick_tile_w(W + pad))[:, :W]
    return y2d.reshape(orig_shape)


# ----------------------------------------------------------------------------
# BoxListOps.flip(target, FlipDim.WIDTH) equivalent (plain-JAX elementwise glue)
# ----------------------------------------------------------------------------
def flip_boxes_xyxy(boxes_xyxy: jax.Array, image_width: int) -> jax.Array:
    # TODO(synk): maskrcnn-benchmark-style BoxLists subtract a TO_REMOVE=1 pixel
    #             when flipping xyxy boxes; continuous coordinates are used here.
    xmin = boxes_xyxy[:, 0:1]
    ymin = boxes_xyxy[:, 1:2]
    xmax = boxes_xyxy[:, 2:3]
    ymax = boxes_xyxy[:, 3:4]
    new_xmin = image_width - xmax
    new_xmax = image_width - xmin
    return jnp.concatenate([new_xmin, ymin, new_xmax, ymax], axis=-1)


# ----------------------------------------------------------------------------
# Module wrapper (forward pass equivalent)
# ----------------------------------------------------------------------------
class RandomHorizontalFlip:
    """Performs a horizontal flip of image + boxes with probability `prob`."""

    def __init__(self, prob: float = 0.5):
        self.prob = prob

    def __call__(self, image: jax.Array, boxes_xyxy: jax.Array):
        # Host-side Python randomness, exactly as in the original module
        # (`random.random() < self.prob`).
        if random.random() < self.prob:
            width = image.shape[-1]
            image = hflip_image_pallas(image)
            boxes_xyxy = flip_boxes_xyxy(boxes_xyxy, width)
        return image, boxes_xyxy


# ----------------------------------------------------------------------------
# Main
# ----------------------------------------------------------------------------
if __name__ == "__main__":
    random.seed(0)
    key = jax.random.PRNGKey(0)
    k_img, k_box = jax.random.split(key)

    # Small CHW image: C=3, H=16, W=128 (width already lane-dense).
    C, H, W = 3, 16, 128
    image = jax.random.uniform(k_img, (C, H, W), dtype=jnp.float32)
    # 5 boxes in xyxy pixel coordinates inside the image.
    boxes = jax.random.uniform(k_box, (5, 4), dtype=jnp.float32) * jnp.asarray(
        [W, H, W, H], dtype=jnp.float32)

    module = RandomHorizontalFlip(prob=1.0)  # always flip -> deterministic demo
    out_image, out_boxes = module(image, boxes)
    jax.block_until_ready(out_image)
    jax.block_until_ready(out_boxes)

    assert out_image.shape == (C, H, W), out_image.shape
    assert out_boxes.shape == (5, 4), out_boxes.shape

    # Validate against the plain-JAX reference (flip should be ~bit-exact).
    ref_image = jnp.flip(image, axis=-1)
    assert bool(jnp.allclose(out_image, ref_image, rtol=1e-6, atol=1e-6))
    ref_boxes = jnp.stack(
        [W - boxes[:, 2], boxes[:, 1], W - boxes[:, 0], boxes[:, 3]], axis=-1)
    assert bool(jnp.allclose(out_boxes, ref_boxes, rtol=1e-5, atol=1e-5))

    print("KERNEL_OK")
</pallas_src>

<mosaic_0001>
module attributes {stable_mosaic.version = 11 : i64} {
  func.func @kernel(%arg0: i32, %arg1: i32, %arg2: memref<32x128xf32, #tpu.memory_space<vmem>>, %arg3: memref<32x128xf32, #tpu.memory_space<vmem>>) attributes {dimension_semantics = [#tpu.dimension_semantics<parallel>, #tpu.dimension_semantics<parallel>], iteration_bounds = array<i64: 2, 1>, scalar_prefetch = 0 : i64, scratch_operands = 0 : i64, tpu.core_type = #tpu.core_type<tc>, window_params = [{transform_indices = @transform_0, window_bounds = array<i64: 32, 128>}, {transform_indices = @transform_1, window_bounds = array<i64: 32, 128>}]} {
    %0 = tpu.iota {dimensions = array<i32: 0>} : vector<128x128xi32>
    %1 = tpu.iota {dimensions = array<i32: 1>} : vector<128x128xi32>
    %2 = arith.addi %0, %1 : vector<128x128xi32>
    %c127_i32 = arith.constant 127 : i32
    %3 = vector.broadcast %c127_i32 : i32 to vector<128x128xi32>
    %4 = arith.cmpi eq, %2, %3 : vector<128x128xi32>
    %5 = arith.extui %4 : vector<128x128xi1> to vector<128x128xi32>
    %6 = arith.sitofp %5 : vector<128x128xi32> to vector<128x128xf32>
    %c0 = arith.constant 0 : index
    %c0_0 = arith.constant 0 : index
    %7 = vector.load %arg2[%c0, %c0_0] : memref<32x128xf32, #tpu.memory_space<vmem>>, vector<32x128xf32>
    %cst = arith.constant dense<0.000000e+00> : vector<32x128xf32>
    %8 = tpu.matmul %7, %6, %cst {dimension_numbers = #tpu.dot_dimension_numbers<[1], [0], [0], [1], [0, 0, 1, 1], [], []>, precision = #tpu.contract_precision<fp32>} : vector<32x128xf32>, vector<128x128xf32>, vector<32x128xf32> -> vector<32x128xf32>
    %c0_1 = arith.constant 0 : index
    %c0_2 = arith.constant 0 : index
    %9 = vector.load %arg3[%c0_1, %c0_2] : memref<32x128xf32, #tpu.memory_space<vmem>>, vector<32x128xf32>
    tpu.vector_store %arg3[%c0_1, %c0_2], %8 {strides = array<i32>} : memref<32x128xf32, #tpu.memory_space<vmem>>, vector<32x128xf32>,
    return
  }
  func.func @transform_0(%arg0: i32, %arg1: i32) -> (i32, i32) {
    %c0_i32 = arith.constant 0 : i32
    return %arg0, %arg1 : i32, i32
  }
  func.func @transform_1(%arg0: i32, %arg1: i32) -> (i32, i32) {
    %c0_i32 = arith.constant 0 : i32
    %0 = arith.subi %c0_i32, %arg1 : i32
    %c0_i32_0 = arith.constant 0 : i32
    return %arg0, %0 : i32, i32
  }
}

</mosaic_0001>

<llo_original>
// kernel: tpu_custom_call.1
$region0: #{tpu_custom_call.1}
  #allocation0 [shape = 'u32[]', space=smem, size = 0x4, offset = 0x4, fixed_abs, tag = 'smem constant byte address 0x4 - core index']
  #allocation1 [shape = 'u32[144,128]{1,0:T(1,128)}', space=vmem, size = 0x12000, scoped, tag = 'internal scratch']
  %s0 = inlined_call_operand.hbm [shape: f32[48,128], index: 0, kind: input, shape index: {}]
  %s1 = inlined_call_operand.hbm [shape: f32[48,128], index: 1, kind: output, shape index: {}]
  %s2 = sld [smem:[#allocation0]]
  $region41: #{tpu_custom_call.1} parent=0
    _
  %s4 = ssub.s32 1, %s2
  %s5 = scalar_select 0, %s4, %s2
  $region1: #{tpu_custom_call.1} parent=0
    #allocation2 [shape = 'u8[32768]{0}', space=vmem, size = 0x8000, scoped, tag = 'input window, operand 0']
    #allocation3 [shape = 's32[2]{0}', space=sflag, size = 0x8, scoped, tag = 'scoped memory for tpu_custom_call.1']
    #allocation4 [shape = 's32[2]{0}', space=sflag, size = 0x8, scoped, tag = 'scoped memory for tpu_custom_call.1']
    #allocation5 [shape = 'u8[32768]{0}', space=vmem, size = 0x8000, scoped, tag = 'output window, operand 0']
    %6 = vsyncpa [#allocation3], 0
    %s7 = scalar_lea.sflag [#allocation3], 1
    %8 = vsyncpa %s7, 0
    %9 = vsyncpa [#allocation4], 0
    %s10 = scalar_lea.sflag [#allocation4], 1
    %11 = vsyncpa %s10, 0
    loop: start=0, step=1, limit=4
    $region2: #{tpu_custom_call.1} parent=1 // loop_pre_header
      _
    $region3: #{tpu_custom_call.1} parent=1 // loop_header
      %s13 = sphi 0, %s17
      %p14 = scmp.ge.s32.totalorder %s13, 4
      %s20 = sphi 0, %s32
      %s21 = sphi 0, %s28
      %s22 = sphi 0, %s20
      %s23 = sphi 0, %s21
      %s24 = sphi 0, %s22
      %s25 = sphi 0, %s23
      %s37 = sphi 0, %s39
      %s40 = sphi 0, %s37
      %s41 = sphi 0, %s40
      %s57 = sphi 0, %s41
      %s67 = sphi 0, %s69
      %s70 = sphi 0, %s67
      %s71 = sphi 0, %s70
      %s87 = sphi 0, %s71
    $region4: #{tpu_custom_call.1} parent=1 // loop_header_branch
      %16 = sbr.rel (%p14) target = $region8
    $region5: #{tpu_custom_call.1} parent=1 // loop_body
      %s18 = ssub.s32 %s13, 1
      %s19 = ssub.s32 %s13, 2
      %s26 = sadd.s32 1, %s21
      %p27 = scmp.ge.s32.totalorder %s26, 1
      %s28 = scalar_select %p27, 0, %s26
      %s29 = sadd.s32 1, %s20
      %s30 = scalar_select %p27, %s29, %s20
      %p31 = scmp.ge.s32.totalorder %s30, 2
      %s32 = scalar_select %p31, 0, %s30
      %s33 = ssub.s32 %s20, %s32
      %s34 = ssub.s32 %s21, %s28
      %s35 = sor.u32 %s33, %s34
      %p36 = scmp.eq.s32.totalorder %s35, 0
      %s38 = sadd.s32 %s37, 1
      %s39 = scalar_select %p36, %s37, %s38
      %p42 = pneg %p36
      %p43 = scmp.eq.s32.totalorder %s13, 1
      %p44 = por %p42, %p43
      %p45 = scmp.ne.s32.totalorder %s37, %s40
      %p46 = scmp.eq.s32.totalorder %s13, 0
      %p47 = por %p45, %p46
      %p48 = scmp.ne.s32.totalorder %s37, %s40
      %p49 = scmp.eq.s32.totalorder %s18, 1
      %p50 = por %p48, %p49
      %p51 = scmp.ne.s32.totalorder %s40, %s41
      %p52 = scmp.eq.s32.totalorder %s18, 0
      %p53 = por %p51, %p52
      %p54 = scmp.ne.s32.totalorder %s40, %s41
      %p55 = scmp.eq.s32.totalorder %s19, 1
      %p56 = por %p54, %p55
      %p58 = scmp.ne.s32.totalorder %s41, %s57
      %p59 = scmp.eq.s32.totalorder %s19, 0
      %p60 = por %p58, %p59
      %s61 = ssub.s32 0, %s21
      %s62 = ssub.s32 0, %s28
      %s63 = ssub.s32 %s20, %s32
      %s64 = ssub.s32 %s61, %s62
      %s65 = sor.u32 %s63, %s64
      %p66 = scmp.eq.s32.totalorder %s65, 0
      %s68 = sadd.s32 %s67, 1
      %s69 = scalar_select %p66, %s67, %s68
      %p72 = pneg %p66
      %p73 = scmp.eq.s32.totalorder %s13, 1
      %p74 = por %p72, %p73
      %p75 = scmp.ne.s32.totalorder %s67, %s70
      %p76 = scmp.eq.s32.totalorder %s13, 0
      %p77 = por %p75, %p76
      %p78 = scmp.ne.s32.totalorder %s67, %s70
      %p79 = scmp.eq.s32.totalorder %s18, 1
      %p80 = por %p78, %p79
      %p81 = scmp.ne.s32.totalorder %s70, %s71
      %p82 = scmp.eq.s32.totalorder %s18, 0
      %p83 = por %p81, %p82
      %p84 = scmp.ne.s32.totalorder %s70, %s71
      %p85 = scmp.eq.s32.totalorder %s19, 1
      %p86 = por %p84, %p85
      %p88 = scmp.ne.s32.totalorder %s71, %s87
      %p89 = scmp.eq.s32.totalorder %s19, 0
      %p90 = por %p88, %p89
      %p91 = scmp.le.s32.totalorder 1, %s13
      %p92 = scmp.lt.s32.totalorder %s13, 3
      %p93 = pnand %p91, %p92
      %p94 = pneg %p93
      // Predicated region
      $region9: #{tpu_custom_call.1} parent=5 // pred_check
        _
      $region10: #{tpu_custom_call.1} parent=5 // pred_check_branch
        %96 = sbr.rel (%p93) target = $region12
      $region11: #{tpu_custom_call.1} parent=5 // pred_region
        %s97 = ssub.s32 %s13, 1
      $region12: #{tpu_custom_call.1} parent=5 // pred_fallthru
        _
      %p98 = scmp.lt.s32.totalorder %s13, 2
      // Predicated region
      $region13: #{tpu_custom_call.1} parent=5 // pred_check
        %p99 = pneg %p98
      $region14: #{tpu_custom_call.1} parent=5 // pred_check_branch
        %101 = sbr.rel (%p99) target = $region16
      $region15: #{tpu_custom_call.1} parent=5 // pred_region
        // Predicated region
        $region17: #{tpu_custom_call.1} parent=15 // pred_check
          %p102 = pneg %p47
        $region18: #{tpu_custom_call.1} parent=15 // pred_check_branch
          %104 = sbr.rel (%p102) target = $region20
        $region19: #{tpu_custom_call.1} parent=15 // pred_region
          %s105 = sand.u32 %s37, 1
          %s106 = scalar_lea.sflag [#allocation3], %s105
          %s107 = sand.u32 %s37, 1
          %s108 = smul.addr %s107, 32
          %s109 = scalar_lea.vmem [#allocation2], %s108
          %s110 = smul.u32 4, %s20
          %s111 = ssub.s32 6, %s110
          %p112 = scmp.lt.s32.totalorder %s111, 4
          %s113 = scalar_select %p112, %s111, 4
          %s114 = smul.u32 128, %s113
          %s116 = ssub.s32 512, %s114
          %117 = vsyncadd %s106, %s116
          %p118 = scmp.ne.s32.totalorder 0, %s114
          %s119 = sadd.s32 %s21, %s110
          %s120 = smul.addr %s119, 128
          %s121 = scalar_lea.hbm %s0, %s120
          %s122 = smul.u32 8, %s113
          %s123 = sshll.u32 %s109, 4
          %s124 = int_to_ptr.vmem [resolvable:$true] %s123
          %s125 = sshll.u32 %s122, 4
          %129 = dma.hbm_to_vmem [thread:$0]  (%p118), %s121, %s125, %s124, %s106, 128, 128, 8
        $region20: #{tpu_custom_call.1} parent=15 // pred_fallthru
          _
      $region16: #{tpu_custom_call.1} parent=5 // pred_fallthru
        _
      %p130 = scmp.le.s32.totalorder 1, %s13
      %p131 = scmp.lt.s32.totalorder %s13, 3
      %p132 = pnand %p130, %p131
      %p133 = pneg %p132
      // Predicated region
      $region21: #{tpu_custom_call.1} parent=5 // pred_check
        _
      $region22: #{tpu_custom_call.1} parent=5 // pred_check_branch
        %135 = sbr.rel (%p132) target = $region24
      $region23: #{tpu_custom_call.1} parent=5 // pred_region
        %s136 = ssub.s32 %s13, 1
        %s137 = sand.u32 %s40, 1
        %s138 = scalar_lea.sflag [#allocation3], %s137
        %s139 = sand.u32 %s40, 1
        %s140 = smul.addr %s139, 32
        %s141 = scalar_lea.vmem [#allocation2], %s140
        // Predicated region
        $region25: #{tpu_custom_call.1} parent=23 // pred_check
          %p142 = pneg %p53
        $region26: #{tpu_custom_call.1} parent=23 // pred_check_branch
          %144 = sbr.rel (%p142) target = $region28
        $region27: #{tpu_custom_call.1} parent=23 // pred_region
          %145 = dma.done %s138, 512
        $region28: #{tpu_custom_call.1} parent=23 // pred_fallthru
          _
        %s146 = sand.u32 %s40, 1
        %s147 = scalar_lea.sflag [#allocation3], %s146
        %s148 = sand.u32 %s40, 1
        %s149 = smul.addr %s148, 32
        %s150 = scalar_lea.vmem [#allocation2], %s149
        %p151 = pneg %p53
        %p152 = pneg %p50
        %p153 = pneg %p83
        %p154 = pneg %p80
        %s155 = sand.u32 %s70, 1
        %s156 = scalar_lea.sflag [#allocation4], %s155
        %s157 = sand.u32 %s70, 1
        %s158 = smul.addr %s157, 32
        %s159 = scalar_lea.vmem [#allocation5], %s158
        %s160 = smul.u32 4, %s22
        %s161 = ssub.s32 6, %s160
        %p162 = scmp.lt.s32.totalorder %s161, 4
        %s163 = scalar_select %p162, %s161, 4
        %s164 = smul.u32 128, %s163
        %s165 = ssub.s32 0, %s23
        %s166 = smul.u32 4, %s22
        %s167 = ssub.s32 6, %s166
        %p168 = scmp.lt.s32.totalorder %s167, 4
        %s169 = scalar_select %p168, %s167, 4
        %s170 = smul.u32 128, %s169
        %v171 = vlaneseq
        %v172 = vshrl.u32 %v171, 7
        %v173 = vadd.s32 %v172, 8
        %v174 = vadd.s32 %v172, 16
        %v175 = vadd.s32 %v172, 24
        %v176 = vadd.s32 %v172, 32
        %v177 = vadd.s32 %v172, 40
        %v178 = vadd.s32 %v172, 48
        %v179 = vadd.s32 %v172, 56
        %v180 = vadd.s32 %v172, 64
        %v181 = vadd.s32 %v172, 72
        %v182 = vadd.s32 %v172, 80
        %v183 = vadd.s32 %v172, 88
        %v184 = vadd.s32 %v172, 96
        %v185 = vadd.s32 %v172, 104
        %v186 = vadd.s32 %v172, 112
        %v187 = vadd.s32 %v172, 120
        %v188 = vlaneseq
        %v189 = vand.u32 %v188, 127
        %v190 = vadd.s32 %v172, %v189
        %v191 = vadd.s32 %v173, %v189
        %v192 = vadd.s32 %v174, %v189
        %v193 = vadd.s32 %v175, %v189
        %v194 = vadd.s32 %v176, %v189
        %v195 = vadd.s32 %v177, %v189
        %v196 = vadd.s32 %v178, %v189
        %v197 = vadd.s32 %v179, %v189
        %v198 = vadd.s32 %v180, %v189
        %v199 = vadd.s32 %v181, %v189
        %v200 = vadd.s32 %v182, %v189
        %v201 = vadd.s32 %v183, %v189
        %v202 = vadd.s32 %v184, %v189
        %v203 = vadd.s32 %v185, %v189
        %v204 = vadd.s32 %v186, %v189
        %v205 = vadd.s32 %v187, %v189
        %vm206 = vcmp.eq.s32.totalorder %v190, 127
        %vm207 = vcmp.eq.s32.totalorder %v191, 127
        %vm208 = vcmp.eq.s32.totalorder %v192, 127
        %vm209 = vcmp.eq.s32.totalorder %v193, 127
        %vm210 = vcmp.eq.s32.totalorder %v194, 127
        %vm211 = vcmp.eq.s32.totalorder %v195, 127
        %vm212 = vcmp.eq.s32.totalorder %v196, 127
        %vm213 = vcmp.eq.s32.totalorder %v197, 127
        %vm214 = vcmp.eq.s32.totalorder %v198, 127
        %vm215 = vcmp.eq.s32.totalorder %v199, 127
        %vm216 = vcmp.eq.s32.totalorder %v200, 127
        %vm217 = vcmp.eq.s32.totalorder %v201, 127
        %vm218 = vcmp.eq.s32.totalorder %v202, 127
        %vm219 = vcmp.eq.s32.totalorder %v203, 127
        %vm220 = vcmp.eq.s32.totalorder %v204, 127
        %vm221 = vcmp.eq.s32.totalorder %v205, 127
        %v222 = vsel %vm206, 1, 0
        %v223 = vsel %vm207, 1, 0
        %v224 = vsel %vm208, 1, 0
        %v225 = vsel %vm209, 1, 0
        %v226 = vsel %vm210, 1, 0
        %v227 = vsel %vm211, 1, 0
        %v228 = vsel %vm212, 1, 0
        %v229 = vsel %vm213, 1, 0
        %v230 = vsel %vm214, 1, 0
        %v231 = vsel %vm215, 1, 0
        %v232 = vsel %vm216, 1, 0
        %v233 = vsel %vm217, 1, 0
        %v234 = vsel %vm218, 1, 0
        %v235 = vsel %vm219, 1, 0
        %v236 = vsel %vm220, 1, 0
        %v237 = vsel %vm221, 1, 0
        %v238 = vcvt.s32.f32 %v222
        %v239 = vcvt.s32.f32 %v223
        %v240 = vcvt.s32.f32 %v224
        %v241 = vcvt.s32.f32 %v225
        %v242 = vcvt.s32.f32 %v226
        %v243 = vcvt.s32.f32 %v227
        %v244 = vcvt.s32.f32 %v228
        %v245 = vcvt.s32.f32 %v229
        %v246 = vcvt.s32.f32 %v230
        %v247 = vcvt.s32.f32 %v231
        %v248 = vcvt.s32.f32 %v232
        %v249 = vcvt.s32.f32 %v233
        %v250 = vcvt.s32.f32 %v234
        %v251 = vcvt.s32.f32 %v235
        %v252 = vcvt.s32.f32 %v236
        %v253 = vcvt.s32.f32 %v237
        %v254 = vld [vmem:[%s141] sm:$0xff]
        %v255 = vld [vmem:[%s141 + $0x8] sm:$0xff]
        %v256 = vld [vmem:[%s141 + $0x10] sm:$0xff]
        %v257 = vld [vmem:[%s141 + $0x18] sm:$0xff]
        %258 = vmatprep.subr.mxu0 0.0
        %v259 = vand.u32 %v238, 4294901760
        %260 = vmatpush1.msra.mxu0 %v259
        %261 = vmatprep.subr.mxu0 0.0
        %v262 = vand.u32 %v239, 4294901760
        %263 = vmatpush1.msra.mxu0 %v262
        %264 = vmatprep.subr.mxu0 0.0
        %v265 = vand.u32 %v240, 4294901760
        %266 = vmatpush1.msra.mxu0 %v265
        %267 = vmatprep.subr.mxu0 0.0
        %v268 = vand.u32 %v241, 4294901760
        %269 = vmatpush1.msra.mxu0 %v268
        %270 = vmatprep.subr.mxu0 0.0
        %v271 = vand.u32 %v242, 4294901760
        %272 = vmatpush1.msra.mxu0 %v271
        %273 = vmatprep.subr.mxu0 0.0
        %v274 = vand.u32 %v243, 4294901760
        %275 = vmatpush1.msra.mxu0 %v274
        %276 = vmatprep.subr.mxu0 0.0
        %v277 = vand.u32 %v244, 4294901760
        %278 = vmatpush1.msra.mxu0 %v277
        %279 = vmatprep.subr.mxu0 0.0
        %v280 = vand.u32 %v245, 4294901760
        %281 = vmatpush1.msra.mxu0 %v280
        %282 = vmatprep.subr.mxu0 0.0
        %v283 = vand.u32 %v246, 4294901760
        %284 = vmatpush1.msra.mxu0 %v283
        %285 = vmatprep.subr.mxu0 0.0
        %v286 = vand.u32 %v247, 4294901760
        %287 = vmatpush1.msra.mxu0 %v286
        %288 = vmatprep.subr.mxu0 0.0
        %v289 = vand.u32 %v248, 4294901760
        %290 = vmatpush1.msra.mxu0 %v289
        %291 = vmatprep.subr.mxu0 0.0
        %v292 = vand.u32 %v249, 4294901760
        %293 = vmatpush1.msra.mxu0 %v292
        %294 = vmatprep.subr.mxu0 0.0
        %v295 = vand.u32 %v250, 4294901760
        %296 = vmatpush1.msra.mxu0 %v295
        %297 = vmatprep.subr.mxu0 0.0
        %v298 = vand.u32 %v251, 4294901760
        %299 = vmatpush1.msra.mxu0 %v298
        %300 = vmatprep.subr.mxu0 0.0
        %v301 = vand.u32 %v252, 4294901760
        %302 = vmatpush1.msra.mxu0 %v301
        %303 = vmatprep.subr.mxu0 0.0
        %v304 = vand.u32 %v253, 4294901760
        %305 = vmatpush1.msra.mxu0 %v304
        %306 = vmatprep.subr.mxu0 0.0
        %307 = vmatpush1.msra.mxu0 0.0
        %308 = vmatprep.subr.mxu0 0.0
        %309 = vmatpush1.msra.mxu0 0.0
        %310 = vmatprep.subr.mxu0 0.0
        %311 = vmatpush1.msra.mxu0 0.0
        %312 = vmatprep.subr.mxu0 0.0
        %313 = vmatpush1.msra.mxu0 0.0
        %314 = vmatprep.subr.mxu0 0.0
        %315 = vmatpush1.msra.mxu0 0.0
        %316 = vmatprep.subr.mxu0 0.0
        %317 = vmatpush1.msra.mxu0 0.0
        %318 = vmatprep.subr.mxu0 0.0
        %319 = vmatpush1.msra.mxu0 0.0
        %320 = vmatprep.subr.mxu0 0.0
        %321 = vmatpush1.msra.mxu0 0.0
        %322 = vmatprep.subr.mxu0 0.0
        %323 = vmatpush1.msra.mxu0 0.0
        %324 = vmatprep.subr.mxu0 0.0
        %325 = vmatpush1.msra.mxu0 0.0
        %326 = vmatprep.subr.mxu0 0.0
        %327 = vmatpush1.msra.mxu0 0.0
        %328 = vmatprep.subr.mxu0 0.0
        %329 = vmatpush1.msra.mxu0 0.0
        %330 = vmatprep.subr.mxu0 0.0
        %331 = vmatpush1.msra.mxu0 0.0
        %332 = vmatprep.subr.mxu0 0.0
        %333 = vmatpush1.msra.mxu0 0.0
        %334 = vmatprep.subr.mxu0 0.0
        %335 = vmatpush1.msra.mxu0 0.0
        %336 = vmatprep.subr.mxu0 0.0
        %337 = vmatpush1.msra.mxu0 0.0
        %338 = vmatprep.mubr.f32.mxu0 0.0
        %v339 = vand.u32 %v254, 4294901760
        %v340 = vsub.f32 %v254, %v339
        %v341 = vand.u32 %v340, 4294901760
        %v342 = vsub.f32 %v340, %v341
        %v343 = vand.u32 %v342, 4294901760
        %344 = vmatmul.mubr.f32.gmra.mrb[0].mxu0 %v343
        %v345 = vpop.f32.mrb[0].mxu0
        %v346 = vadd.f32 0.0, %v345
        %v347 = vpop.f32.mrb[0].mxu0
        %348 = vmatprep.mubr.f32.mxu0 0.0
        %v349 = vand.u32 %v255, 4294901760
        %v350 = vsub.f32 %v255, %v349
        %v351 = vand.u32 %v350, 4294901760
        %v352 = vsub.f32 %v350, %v351
        %v353 = vand.u32 %v352, 4294901760
        %354 = vmatmul.mubr.f32.gmra.mrb[0].mxu0 %v353
        %v355 = vpop.f32.mrb[0].mxu0
        %v356 = vadd.f32 0.0, %v355
        %v357 = vpop.f32.mrb[0].mxu0
        %358 = vmatprep.mubr.f32.mxu0 0.0
        %v359 = vand.u32 %v256, 4294901760
        %v360 = vsub.f32 %v256, %v359
        %v361 = vand.u32 %v360, 4294901760
        %v362 = vsub.f32 %v360, %v361
        %v363 = vand.u32 %v362, 4294901760
        %364 = vmatmul.mubr.f32.gmra.mrb[0].mxu0 %v363
        %v365 = vpop.f32.mrb[0].mxu0
        %v366 = vadd.f32 0.0, %v365
        %v367 = vpop.f32.mrb[0].mxu0
        %368 = vmatprep.mubr.f32.mxu0 0.0
        %v369 = vand.u32 %v257, 4294901760
        %v370 = vsub.f32 %v257, %v369
        %v371 = vand.u32 %v370, 4294901760
        %v372 = vsub.f32 %v370, %v371
        %v373 = vand.u32 %v372, 4294901760
        %374 = vmatmul.mubr.f32.gmra.mrb[0].mxu0 %v373
        %v375 = vpop.f32.mrb[0].mxu0
        %v376 = vadd.f32 0.0, %v375
        %v377 = vpop.f32.mrb[0].mxu0
        %378 = vdwg.mxu0
        %379 = vmatprep.subr.mxu0 0.0
        %v380 = vand.u32 %v238, 4294901760
        %v381 = vsub.f32 %v238, %v380
        %v382 = vand.u32 %v381, 4294901760
        %v383 = vsub.f32 %v381, %v382
        %v384 = vand.u32 %v383, 4294901760
        %385 = vmatpush1.msra.mxu0 %v384
        %386 = vmatprep.subr.mxu0 0.0
        %v387 = vand.u32 %v239, 4294901760
        %v388 = vsub.f32 %v239, %v387
        %v389 = vand.u32 %v388, 4294901760
        %v390 = vsub.f32 %v388, %v389
        %v391 = vand.u32 %v390, 4294901760
        %392 = vmatpush1.msra.mxu0 %v391
        %393 = vmatprep.subr.mxu0 0.0
        %v394 = vand.u32 %v240, 4294901760
        %v395 = vsub.f32 %v240, %v394
        %v396 = vand.u32 %v395, 4294901760
        %v397 = vsub.f32 %v395, %v396
        %v398 = vand.u32 %v397, 4294901760
        %399 = vmatpush1.msra.mxu0 %v398
        %400 = vmatprep.subr.mxu0 0.0
        %v401 = vand.u32 %v241, 4294901760
        %v402 = vsub.f32 %v241, %v401
        %v403 = vand.u32 %v402, 4294901760
        %v404 = vsub.f32 %v402, %v403
        %v405 = vand.u32 %v404, 4294901760
        %406 = vmatpush1.msra.mxu0 %v405
        %407 = vmatprep.subr.mxu0 0.0
        %v408 = vand.u32 %v242, 4294901760
        %v409 = vsub.f32 %v242, %v408
        %v410 = vand.u32 %v409, 4294901760
        %v411 = vsub.f32 %v409, %v410
        %v412 = vand.u32 %v411, 4294901760
        %413 = vmatpush1.msra.mxu0 %v412
        %414 = vmatprep.subr.mxu0 0.0
        %v415 = vand.u32 %v243, 4294901760
        %v416 = vsub.f32 %v243, %v415
        %v417 = vand.u32 %v416, 4294901760
        %v418 = vsub.f32 %v416, %v417
        %v419 = vand.u32 %v418, 4294901760
        %420 = vmatpush1.msra.mxu0 %v419
        %421 = vmatprep.subr.mxu0 0.0
        %v422 = vand.u32 %v244, 4294901760
        %v423 = vsub.f32 %v244, %v422
        %v424 = vand.u32 %v423, 4294901760
        %v425 = vsub.f32 %v423, %v424
        %v426 = vand.u32 %v425, 4294901760
        %427 = vmatpush1.msra.mxu0 %v426
        %428 = vmatprep.subr.mxu0 0.0
        %v429 = vand.u32 %v245, 4294901760
        %v430 = vsub.f32 %v245, %v429
        %v431 = vand.u32 %v430, 4294901760
        %v432 = vsub.f32 %v430, %v431
        %v433 = vand.u32 %v432, 4294901760
        %434 = vmatpush1.msra.mxu0 %v433
        %435 = vmatprep.subr.mxu0 0.0
        %v436 = vand.u32 %v246, 4294901760
        %v437 = vsub.f32 %v246, %v436
        %v438 = vand.u32 %v437, 4294901760
        %v439 = vsub.f32 %v437, %v438
        %v440 = vand.u32 %v439, 4294901760
        %441 = vmatpush1.msra.mxu0 %v440
        %442 = vmatprep.subr.mxu0 0.0
        %v443 = vand.u32 %v247, 4294901760
        %v444 = vsub.f32 %v247, %v443
        %v445 = vand.u32 %v444, 4294901760
        %v446 = vsub.f32 %v444, %v445
        %v447 = vand.u32 %v446, 4294901760
        %448 = vmatpush1.msra.mxu0 %v447
        %449 = vmatprep.subr.mxu0 0.0
        %v450 = vand.u32 %v248, 4294901760
        %v451 = vsub.f32 %v248, %v450
        %v452 = vand.u32 %v451, 4294901760
        %v453 = vsub.f32 %v451, %v452
        %v454 = vand.u32 %v453, 4294901760
        %455 = vmatpush1.msra.mxu0 %v454
        %456 = vmatprep.subr.mxu0 0.0
        %v457 = vand.u32 %v249, 4294901760
        %v458 = vsub.f32 %v249, %v457
        %v459 = vand.u32 %v458, 4294901760
        %v460 = vsub.f32 %v458, %v459
        %v461 = vand.u32 %v460, 4294901760
        %462 = vmatpush1.msra.mxu0 %v461
        %463 = vmatprep.subr.mxu0 0.0
        %v464 = vand.u32 %v250, 4294901760
        %v465 = vsub.f32 %v250, %v464
        %v466 = vand.u32 %v465, 4294901760
        %v467 = vsub.f32 %v465, %v466
        %v468 = vand.u32 %v467, 4294901760
        %469 = vmatpush1.msra.mxu0 %v468
        %470 = vmatprep.subr.mxu0 0.0
        %v471 = vand.u32 %v251, 4294901760
        %v472 = vsub.f32 %v251, %v471
        %v473 = vand.u32 %v472, 4294901760
        %v474 = vsub.f32 %v472, %v473
        %v475 = vand.u32 %v474, 4294901760
        %476 = vmatpush1.msra.mxu0 %v475
        %477 = vmatprep.subr.mxu0 0.0
        %v478 = vand.u32 %v252, 4294901760
        %v479 = vsub.f32 %v252, %v478
        %v480 = vand.u32 %v479, 4294901760
        %v481 = vsub.f32 %v479, %v480
        %v482 = vand.u32 %v481, 4294901760
        %483 = vmatpush1.msra.mxu0 %v482
        %484 = vmatprep.subr.mxu0 0.0
        %v485 = vand.u32 %v253, 4294901760
        %v486 = vsub.f32 %v253, %v485
        %v487 = vand.u32 %v486, 4294901760
        %v488 = vsub.f32 %v486, %v487
        %v489 = vand.u32 %v488, 4294901760
        %490 = vmatpush1.msra.mxu0 %v489
        %491 = vmatprep.subr.mxu0 0.0
        %492 = vmatpush1.msra.mxu0 0.0
        %493 = vmatprep.subr.mxu0 0.0
        %494 = vmatpush1.msra.mxu0 0.0
        %495 = vmatprep.subr.mxu0 0.0
        %496 = vmatpush1.msra.mxu0 0.0
        %497 = vmatprep.subr.mxu0 0.0
        %498 = vmatpush1.msra.mxu0 0.0
        %499 = vmatprep.subr.mxu0 0.0
        %500 = vmatpush1.msra.mxu0 0.0
        %501 = vmatprep.subr.mxu0 0.0
        %502 = vmatpush1.msra.mxu0 0.0
        %503 = vmatprep.subr.mxu0 0.0
        %504 = vmatpush1.msra.mxu0 0.0
        %505 = vmatprep.subr.mxu0 0.0
        %506 = vmatpush1.msra.mxu0 0.0
        %507 = vmatprep.subr.mxu0 0.0
        %508 = vmatpush1.msra.mxu0 0.0
        %509 = vmatprep.subr.mxu0 0.0
        %510 = vmatpush1.msra.mxu0 0.0
        %511 = vmatprep.subr.mxu0 0.0
        %512 = vmatpush1.msra.mxu0 0.0
        %513 = vmatprep.subr.mxu0 0.0
        %514 = vmatpush1.msra.mxu0 0.0
        %515 = vmatprep.subr.mxu0 0.0
        %516 = vmatpush1.msra.mxu0 0.0
        %517 = vmatprep.subr.mxu0 0.0
        %518 = vmatpush1.msra.mxu0 0.0
        %519 = vmatprep.subr.mxu0 0.0
        %520 = vmatpush1.msra.mxu0 0.0
        %521 = vmatprep.subr.mxu0 0.0
        %522 = vmatpush1.msra.mxu0 0.0
        %523 = vmatprep.mubr.f32.mxu0 0.0
        %v524 = vand.u32 %v254, 4294901760
        %525 = vmatmul.mubr.f32.gmra.mrb[0].mxu0 %v524
        %v526 = vpop.f32.mrb[0].mxu0
        %v527 = vadd.f32 %v346, %v526
        %v528 = vpop.f32.mrb[0].mxu0
        %529 = vmatprep.mubr.f32.mxu0 0.0
        %v530 = vand.u32 %v255, 4294901760
        %531 = vmatmul.mubr.f32.gmra.mrb[0].mxu0 %v530
        %v532 = vpop.f32.mrb[0].mxu0
        %v533 = vadd.f32 %v356, %v532
        %v534 = vpop.f32.mrb[0].mxu0
        %535 = vmatprep.mubr.f32.mxu0 0.0
        %v536 = vand.u32 %v256, 4294901760
        %537 = vmatmul.mubr.f32.gmra.mrb[0].mxu0 %v536
        %v538 = vpop.f32.mrb[0].mxu0
        %v539 = vadd.f32 %v366, %v538
        %v540 = vpop.f32.mrb[0].mxu0
        %541 = vmatprep.mubr.f32.mxu0 0.0
        %v542 = vand.u32 %v257, 4294901760
        %543 = vmatmul.mubr.f32.gmra.mrb[0].mxu0 %v542
        %v544 = vpop.f32.mrb[0].mxu0
        %v545 = vadd.f32 %v376, %v544
        %v546 = vpop.f32.mrb[0].mxu0
        %547 = vdwg.mxu0
        %548 = vmatprep.subr.mxu0 0.0
        %v549 = vand.u32 %v238, 4294901760
        %v550 = vsub.f32 %v238, %v549
        %551 = vmatpush1.msra.mxu0 %v550
        %552 = vmatprep.subr.mxu0 0.0
        %v553 = vand.u32 %v239, 4294901760
        %v554 = vsub.f32 %v239, %v553
        %555 = vmatpush1.msra.mxu0 %v554
        %556 = vmatprep.subr.mxu0 0.0
        %v557 = vand.u32 %v240, 4294901760
        %v558 = vsub.f32 %v240, %v557
        %559 = vmatpush1.msra.mxu0 %v558
        %560 = vmatprep.subr.mxu0 0.0
        %v561 = vand.u32 %v241, 4294901760
        %v562 = vsub.f32 %v241, %v561
        %563 = vmatpush1.msra.mxu0 %v562
        %564 = vmatprep.subr.mxu0 0.0
        %v565 = vand.u32 %v242, 4294901760
        %v566 = vsub.f32 %v242, %v565
        %567 = vmatpush1.msra.mxu0 %v566
        %568 = vmatprep.subr.mxu0 0.0
        %v569 = vand.u32 %v243, 4294901760
        %v570 = vsub.f32 %v243, %v569
        %571 = vmatpush1.msra.mxu0 %v570
        %572 = vmatprep.subr.mxu0 0.0
        %v573 = vand.u32 %v244, 4294901760
        %v574 = vsub.f32 %v244, %v573
        %575 = vmatpush1.msra.mxu0 %v574
        %576 = vmatprep.subr.mxu0 0.0
        %v577 = vand.u32 %v245, 4294901760
        %v578 = vsub.f32 %v245, %v577
        %579 = vmatpush1.msra.mxu0 %v578
        %580 = vmatprep.subr.mxu0 0.0
        %v581 = vand.u32 %v246, 4294901760
        %v582 = vsub.f32 %v246, %v581
        %583 = vmatpush1.msra.mxu0 %v582
        %584 = vmatprep.subr.mxu0 0.0
        %v585 = vand.u32 %v247, 4294901760
        %v586 = vsub.f32 %v247, %v585
        %587 = vmatpush1.msra.mxu0 %v586
        %588 = vmatprep.subr.mxu0 0.0
        %v589 = vand.u32 %v248, 4294901760
        %v590 = vsub.f32 %v248, %v589
        %591 = vmatpush1.msra.mxu0 %v590
        %592 = vmatprep.subr.mxu0 0.0
        %v593 = vand.u32 %v249, 4294901760
        %v594 = vsub.f32 %v249, %v593
        %595 = vmatpush1.msra.mxu0 %v594
        %596 = vmatprep.subr.mxu0 0.0
        %v597 = vand.u32 %v250, 4294901760
        %v598 = vsub.f32 %v250, %v597
        %599 = vmatpush1.msra.mxu0 %v598
        %600 = vmatprep.subr.mxu0 0.0
        %v601 = vand.u32 %v251, 4294901760
        %v602 = vsub.f32 %v251, %v601
        %603 = vmatpush1.msra.mxu0 %v602
        %604 = vmatprep.subr.mxu0 0.0
        %v605 = vand.u32 %v252, 4294901760
        %v606 = vsub.f32 %v252, %v605
        %607 = vmatpush1.msra.mxu0 %v606
        %608 = vmatprep.subr.mxu0 0.0
        %v609 = vand.u32 %v253, 4294901760
        %v610 = vsub.f32 %v253, %v609
        %611 = vmatpush1.msra.mxu0 %v610
        %612 = vmatprep.subr.mxu0 0.0
        %613 = vmatpush1.msra.mxu0 0.0
        %614 = vmatprep.subr.mxu0 0.0
        %615 = vmatpush1.msra.mxu0 0.0
        %616 = vmatprep.subr.mxu0 0.0
        %617 = vmatpush1.msra.mxu0 0.0
        %618 = vmatprep.subr.mxu0 0.0
        %619 = vmatpush1.msra.mxu0 0.0
        %620 = vmatprep.subr.mxu0 0.0
        %621 = vmatpush1.msra.mxu0 0.0
        %622 = vmatprep.subr.mxu0 0.0
        %623 = vmatpush1.msra.mxu0 0.0
        %624 = vmatprep.subr.mxu0 0.0
        %625 = vmatpush1.msra.mxu0 0.0
        %626 = vmatprep.subr.mxu0 0.0
        %627 = vmatpush1.msra.mxu0 0.0
        %628 = vmatprep.subr.mxu0 0.0
        %629 = vmatpush1.msra.mxu0 0.0
        %630 = vmatprep.subr.mxu0 0.0
        %631 = vmatpush1.msra.mxu0 0.0
        %632 = vmatprep.subr.mxu0 0.0
        %633 = vmatpush1.msra.mxu0 0.0
        %634 = vmatprep.subr.mxu0 0.0
        %635 = vmatpush1.msra.mxu0 0.0
        %636 = vmatprep.subr.mxu0 0.0
        %637 = vmatpush1.msra.mxu0 0.0
        %638 = vmatprep.subr.mxu0 0.0
        %639 = vmatpush1.msra.mxu0 0.0
        %640 = vmatprep.subr.mxu0 0.0
        %641 = vmatpush1.msra.mxu0 0.0
        %642 = vmatprep.subr.mxu0 0.0
        %643 = vmatpush1.msra.mxu0 0.0
        %644 = vmatprep.mubr.f32.mxu0 0.0
        %v645 = vand.u32 %v254, 4294901760
        %v646 = vsub.f32 %v254, %v645
        %647 = vmatmul.mubr.f32.gmra.mrb[0].mxu0 %v646
        %v648 = vpop.f32.mrb[0].mxu0
        %v649 = vadd.f32 %v527, %v648
        %v650 = vpop.f32.mrb[0].mxu0
        %651 = vmatprep.mubr.f32.mxu0 0.0
        %v652 = vand.u32 %v255, 4294901760
        %v653 = vsub.f32 %v255, %v652
        %654 = vmatmul.mubr.f32.gmra.mrb[0].mxu0 %v653
        %v655 = vpop.f32.mrb[0].mxu0
        %v656 = vadd.f32 %v533, %v655
        %v657 = vpop.f32.mrb[0].mxu0
        %658 = vmatprep.mubr.f32.mxu0 0.0
        %v659 = vand.u32 %v256, 4294901760
        %v660 = vsub.f32 %v256, %v659
        %661 = vmatmul.mubr.f32.gmra.mrb[0].mxu0 %v660
        %v662 = vpop.f32.mrb[0].mxu0
        %v663 = vadd.f32 %v539, %v662
        %v664 = vpop.f32.mrb[0].mxu0
        %665 = vmatprep.mubr.f32.mxu0 0.0
        %v666 = vand.u32 %v257, 4294901760
        %v667 = vsub.f32 %v257, %v666
        %668 = vmatmul.mubr.f32.gmra.mrb[0].mxu0 %v667
        %v669 = vpop.f32.mrb[0].mxu0
        %v670 = vadd.f32 %v545, %v669
        %v671 = vpop.f32.mrb[0].mxu0
        %672 = vdwg.mxu0
        %673 = vmatprep.subr.mxu0 0.0
        %v674 = vand.u32 %v238, 4294901760
        %675 = vmatpush1.msra.mxu0 %v674
        %676 = vmatprep.subr.mxu0 0.0
        %v677 = vand.u32 %v239, 4294901760
        %678 = vmatpush1.msra.mxu0 %v677
        %679 = vmatprep.subr.mxu0 0.0
        %v680 = vand.u32 %v240, 4294901760
        %681 = vmatpush1.msra.mxu0 %v680
        %682 = vmatprep.subr.mxu0 0.0
        %v683 = vand.u32 %v241, 4294901760
        %684 = vmatpush1.msra.mxu0 %v683
        %685 = vmatprep.subr.mxu0 0.0
        %v686 = vand.u32 %v242, 4294901760
        %687 = vmatpush1.msra.mxu0 %v686
        %688 = vmatprep.subr.mxu0 0.0
        %v689 = vand.u32 %v243, 4294901760
        %690 = vmatpush1.msra.mxu0 %v689
        %691 = vmatprep.subr.mxu0 0.0
        %v692 = vand.u32 %v244, 4294901760
        %693 = vmatpush1.msra.mxu0 %v692
        %694 = vmatprep.subr.mxu0 0.0
        %v695 = vand.u32 %v245, 4294901760
        %696 = vmatpush1.msra.mxu0 %v695
        %697 = vmatprep.subr.mxu0 0.0
        %v698 = vand.u32 %v246, 4294901760
        %699 = vmatpush1.msra.mxu0 %v698
        %700 = vmatprep.subr.mxu0 0.0
        %v701 = vand.u32 %v247, 4294901760
        %702 = vmatpush1.msra.mxu0 %v701
        %703 = vmatprep.subr.mxu0 0.0
        %v704 = vand.u32 %v248, 4294901760
        %705 = vmatpush1.msra.mxu0 %v704
        %706 = vmatprep.subr.mxu0 0.0
        %v707 = vand.u32 %v249, 4294901760
        %708 = vmatpush1.msra.mxu0 %v707
        %709 = vmatprep.subr.mxu0 0.0
        %v710 = vand.u32 %v250, 4294901760
        %711 = vmatpush1.msra.mxu0 %v710
        %712 = vmatprep.subr.mxu0 0.0
        %v713 = vand.u32 %v251, 4294901760
        %714 = vmatpush1.msra.mxu0 %v713
        %715 = vmatprep.subr.mxu0 0.0
        %v716 = vand.u32 %v252, 4294901760
        %717 = vmatpush1.msra.mxu0 %v716
        %718 = vmatprep.subr.mxu0 0.0
        %v719 = vand.u32 %v253, 4294901760
        %720 = vmatpush1.msra.mxu0 %v719
        %721 = vmatprep.subr.mxu0 0.0
        %722 = vmatpush1.msra.mxu0 0.0
        %723 = vmatprep.subr.mxu0 0.0
        %724 = vmatpush1.msra.mxu0 0.0
        %725 = vmatprep.subr.mxu0 0.0
        %726 = vmatpush1.msra.mxu0 0.0
        %727 = vmatprep.subr.mxu0 0.0
        %728 = vmatpush1.msra.mxu0 0.0
        %729 = vmatprep.subr.mxu0 0.0
        %730 = vmatpush1.msra.mxu0 0.0
        %731 = vmatprep.subr.mxu0 0.0
        %732 = vmatpush1.msra.mxu0 0.0
        %733 = vmatprep.subr.mxu0 0.0
        %734 = vmatpush1.msra.mxu0 0.0
        %735 = vmatprep.subr.mxu0 0.0
        %736 = vmatpush1.msra.mxu0 0.0
        %737 = vmatprep.subr.mxu0 0.0
        %738 = vmatpush1.msra.mxu0 0.0
        %739 = vmatprep.subr.mxu0 0.0
        %740 = vmatpush1.msra.mxu0 0.0
        %741 = vmatprep.subr.mxu0 0.0
        %742 = vmatpush1.msra.mxu0 0.0
        %743 = vmatprep.subr.mxu0 0.0
        %744 = vmatpush1.msra.mxu0 0.0
        %745 = vmatprep.subr.mxu0 0.0
        %746 = vmatpush1.msra.mxu0 0.0
        %747 = vmatprep.subr.mxu0 0.0
        %748 = vmatpush1.msra.mxu0 0.0
        %749 = vmatprep.subr.mxu0 0.0
        %750 = vmatpush1.msra.mxu0 0.0
        %751 = vmatprep.subr.mxu0 0.0
        %752 = vmatpush1.msra.mxu0 0.0
        %753 = vmatprep.mubr.f32.mxu0 0.0
        %v754 = vand.u32 %v254, 4294901760
        %v755 = vsub.f32 %v254, %v754
        %v756 = vand.u32 %v755, 4294901760
        %757 = vmatmul.mubr.f32.gmra.mrb[0].mxu0 %v756
        %v758 = vpop.f32.mrb[0].mxu0
        %v759 = vadd.f32 %v649, %v758
        %v760 = vpop.f32.mrb[0].mxu0
        %761 = vmatprep.mubr.f32.mxu0 0.0
        %v762 = vand.u32 %v255, 4294901760
        %v763 = vsub.f32 %v255, %v762
        %v764 = vand.u32 %v763, 4294901760
        %765 = vmatmul.mubr.f32.gmra.mrb[0].mxu0 %v764
        %v766 = vpop.f32.mrb[0].mxu0
        %v767 = vadd.f32 %v656, %v766
        %v768 = vpop.f32.mrb[0].mxu0
        %769 = vmatprep.mubr.f32.mxu0 0.0
        %v770 = vand.u32 %v256, 4294901760
        %v771 = vsub.f32 %v256, %v770
        %v772 = vand.u32 %v771, 4294901760
        %773 = vmatmul.mubr.f32.gmra.mrb[0].mxu0 %v772
        %v774 = vpop.f32.mrb[0].mxu0
        %v775 = vadd.f32 %v663, %v774
        %v776 = vpop.f32.mrb[0].mxu0
        %777 = vmatprep.mubr.f32.mxu0 0.0
        %v778 = vand.u32 %v257, 4294901760
        %v779 = vsub.f32 %v257, %v778
        %v780 = vand.u32 %v779, 4294901760
        %781 = vmatmul.mubr.f32.gmra.mrb[0].mxu0 %v780
        %v782 = vpop.f32.mrb[0].mxu0
        %v783 = vadd.f32 %v670, %v782
        %v784 = vpop.f32.mrb[0].mxu0
        %785 = vdwg.mxu0
        %786 = vmatprep.subr.mxu0 0.0
        %v787 = vand.u32 %v238, 4294901760
        %v788 = vsub.f32 %v238, %v787
        %v789 = vand.u32 %v788, 4294901760
        %790 = vmatpush1.msra.mxu0 %v789
        %791 = vmatprep.subr.mxu0 0.0
        %v792 = vand.u32 %v239, 4294901760
        %v793 = vsub.f32 %v239, %v792
        %v794 = vand.u32 %v793, 4294901760
        %795 = vmatpush1.msra.mxu0 %v794
        %796 = vmatprep.subr.mxu0 0.0
        %v797 = vand.u32 %v240, 4294901760
        %v798 = vsub.f32 %v240, %v797
        %v799 = vand.u32 %v798, 4294901760
        %800 = vmatpush1.msra.mxu0 %v799
        %801 = vmatprep.subr.mxu0 0.0
        %v802 = vand.u32 %v241, 4294901760
        %v803 = vsub.f32 %v241, %v802
        %v804 = vand.u32 %v803, 4294901760
        %805 = vmatpush1.msra.mxu0 %v804
        %806 = vmatprep.subr.mxu0 0.0
        %v807 = vand.u32 %v242, 4294901760
        %v808 = vsub.f32 %v242, %v807
        %v809 = vand.u32 %v808, 4294901760
        %810 = vmatpush1.msra.mxu0 %v809
        %811 = vmatprep.subr.mxu0 0.0
        %v812 = vand.u32 %v243, 4294901760
        %v813 = vsub.f32 %v243, %v812
        %v814 = vand.u32 %v813, 4294901760
        %815 = vmatpush1.msra.mxu0 %v814
        %816 = vmatprep.subr.mxu0 0.0
        %v817 = vand.u32 %v244, 4294901760
        %v818 = vsub.f32 %v244, %v817
        %v819 = vand.u32 %v818, 4294901760
        %820 = vmatpush1.msra.mxu0 %v819
        %821 = vmatprep.subr.mxu0 0.0
        %v822 = vand.u32 %v245, 4294901760
        %v823 = vsub.f32 %v245, %v822
        %v824 = vand.u32 %v823, 4294901760
        %825 = vmatpush1.msra.mxu0 %v824
        %826 = vmatprep.subr.mxu0 0.0
        %v827 = vand.u32 %v246, 4294901760
        %v828 = vsub.f32 %v246, %v827
        %v829 = vand.u32 %v828, 4294901760
        %830 = vmatpush1.msra.mxu0 %v829
        %831 = vmatprep.subr.mxu0 0.0
        %v832 = vand.u32 %v247, 4294901760
        %v833 = vsub.f32 %v247, %v832
        %v834 = vand.u32 %v833, 4294901760
        %835 = vmatpush1.msra.mxu0 %v834
        %836 = vmatprep.subr.mxu0 0.0
        %v837 = vand.u32 %v248, 4294901760
        %v838 = vsub.f32 %v248, %v837
        %v839 = vand.u32 %v838, 4294901760
        %840 = vmatpush1.msra.mxu0 %v839
        %841 = vmatprep.subr.mxu0 0.0
        %v842 = vand.u32 %v249, 4294901760
        %v843 = vsub.f32 %v249, %v842
        %v844 = vand.u32 %v843, 4294901760
        %845 = vmatpush1.msra.mxu0 %v844
        %846 = vmatprep.subr.mxu0 0.0
        %v847 = vand.u32 %v250, 4294901760
        %v848 = vsub.f32 %v250, %v847
        %v849 = vand.u32 %v848, 4294901760
        %850 = vmatpush1.msra.mxu0 %v849
        %851 = vmatprep.subr.mxu0 0.0
        %v852 = vand.u32 %v251, 4294901760
        %v853 = vsub.f32 %v251, %v852
        %v854 = vand.u32 %v853, 4294901760
        %855 = vmatpush1.msra.mxu0 %v854
        %856 = vmatprep.subr.mxu0 0.0
        %v857 = vand.u32 %v252, 4294901760
        %v858 = vsub.f32 %v252, %v857
        %v859 = vand.u32 %v858, 4294901760
        %860 = vmatpush1.msra.mxu0 %v859
        %861 = vmatprep.subr.mxu0 0.0
        %v862 = vand.u32 %v253, 4294901760
        %v863 = vsub.f32 %v253, %v862
        %v864 = vand.u32 %v863, 4294901760
        %865 = vmatpush1.msra.mxu0 %v864
        %866 = vmatprep.subr.mxu0 0.0
        %867 = vmatpush1.msra.mxu0 0.0
        %868 = vmatprep.subr.mxu0 0.0
        %869 = vmatpush1.msra.mxu0 0.0
        %870 = vmatprep.subr.mxu0 0.0
        %871 = vmatpush1.msra.mxu0 0.0
        %872 = vmatprep.subr.mxu0 0.0
        %873 = vmatpush1.msra.mxu0 0.0
        %874 = vmatprep.subr.mxu0 0.0
        %875 = vmatpush1.msra.mxu0 0.0
        %876 = vmatprep.subr.mxu0 0.0
        %877 = vmatpush1.msra.mxu0 0.0
        %878 = vmatprep.subr.mxu0 0.0
        %879 = vmatpush1.msra.mxu0 0.0
        %880 = vmatprep.subr.mxu0 0.0
        %881 = vmatpush1.msra.mxu0 0.0
        %882 = vmatprep.subr.mxu0 0.0
        %883 = vmatpush1.msra.mxu0 0.0
        %884 = vmatprep.subr.mxu0 0.0
        %885 = vmatpush1.msra.mxu0 0.0
        %886 = vmatprep.subr.mxu0 0.0
        %887 = vmatpush1.msra.mxu0 0.0
        %888 = vmatprep.subr.mxu0 0.0
        %889 = vmatpush1.msra.mxu0 0.0
        %890 = vmatprep.subr.mxu0 0.0
        %891 = vmatpush1.msra.mxu0 0.0
        %892 = vmatprep.subr.mxu0 0.0
        %893 = vmatpush1.msra.mxu0 0.0
        %894 = vmatprep.subr.mxu0 0.0
        %895 = vmatpush1.msra.mxu0 0.0
        %896 = vmatprep.subr.mxu0 0.0
        %897 = vmatpush1.msra.mxu0 0.0
        %898 = vmatprep.mubr.f32.mxu0 0.0
        %v899 = vand.u32 %v254, 4294901760
        %900 = vmatmul.mubr.f32.gmra.mrb[0].mxu0 %v899
        %v901 = vpop.f32.mrb[0].mxu0
        %v902 = vadd.f32 %v759, %v901
        %v903 = vpop.f32.mrb[0].mxu0
        %904 = vmatprep.mubr.f32.mxu0 0.0
        %v905 = vand.u32 %v255, 4294901760
        %906 = vmatmul.mubr.f32.gmra.mrb[0].mxu0 %v905
        %v907 = vpop.f32.mrb[0].mxu0
        %v908 = vadd.f32 %v767, %v907
        %v909 = vpop.f32.mrb[0].mxu0
        %910 = vmatprep.mubr.f32.mxu0 0.0
        %v911 = vand.u32 %v256, 4294901760
        %912 = vmatmul.mubr.f32.gmra.mrb[0].mxu0 %v911
        %v913 = vpop.f32.mrb[0].mxu0
        %v914 = vadd.f32 %v775, %v913
        %v915 = vpop.f32.mrb[0].mxu0
        %916 = vmatprep.mubr.f32.mxu0 0.0
        %v917 = vand.u32 %v257, 4294901760
        %918 = vmatmul.mubr.f32.gmra.mrb[0].mxu0 %v917
        %v919 = vpop.f32.mrb[0].mxu0
        %v920 = vadd.f32 %v783, %v919
        %v921 = vpop.f32.mrb[0].mxu0
        %922 = vdwg.mxu0
        %923 = vmatprep.subr.mxu0 0.0
        %v924 = vand.u32 %v238, 4294901760
        %925 = vmatpush1.msra.mxu0 %v924
        %926 = vmatprep.subr.mxu0 0.0
        %v927 = vand.u32 %v239, 4294901760
        %928 = vmatpush1.msra.mxu0 %v927
        %929 = vmatprep.subr.mxu0 0.0
        %v930 = vand.u32 %v240, 4294901760
        %931 = vmatpush1.msra.mxu0 %v930
        %932 = vmatprep.subr.mxu0 0.0
        %v933 = vand.u32 %v241, 4294901760
        %934 = vmatpush1.msra.mxu0 %v933
        %935 = vmatprep.subr.mxu0 0.0
        %v936 = vand.u32 %v242, 4294901760
        %937 = vmatpush1.msra.mxu0 %v936
        %938 = vmatprep.subr.mxu0 0.0
        %v939 = vand.u32 %v243, 4294901760
        %940 = vmatpush1.msra.mxu0 %v939
        %941 = vmatprep.subr.mxu0 0.0
        %v942 = vand.u32 %v244, 4294901760
        %943 = vmatpush1.msra.mxu0 %v942
        %944 = vmatprep.subr.mxu0 0.0
        %v945 = vand.u32 %v245, 4294901760
        %946 = vmatpush1.msra.mxu0 %v945
        %947 = vmatprep.subr.mxu0 0.0
        %v948 = vand.u32 %v246, 4294901760
        %949 = vmatpush1.msra.mxu0 %v948
        %950 = vmatprep.subr.mxu0 0.0
        %v951 = vand.u32 %v247, 4294901760
        %952 = vmatpush1.msra.mxu0 %v951
        %953 = vmatprep.subr.mxu0 0.0
        %v954 = vand.u32 %v248, 4294901760
        %955 = vmatpush1.msra.mxu0 %v954
        %956 = vmatprep.subr.mxu0 0.0
        %v957 = vand.u32 %v249, 4294901760
        %958 = vmatpush1.msra.mxu0 %v957
        %959 = vmatprep.subr.mxu0 0.0
        %v960 = vand.u32 %v250, 4294901760
        %961 = vmatpush1.msra.mxu0 %v960
        %962 = vmatprep.subr.mxu0 0.0
        %v963 = vand.u32 %v251, 4294901760
        %964 = vmatpush1.msra.mxu0 %v963
        %965 = vmatprep.subr.mxu0 0.0
        %v966 = vand.u32 %v252, 4294901760
        %967 = vmatpush1.msra.mxu0 %v966
        %968 = vmatprep.subr.mxu0 0.0
        %v969 = vand.u32 %v253, 4294901760
        %970 = vmatpush1.msra.mxu0 %v969
        %971 = vmatprep.subr.mxu0 0.0
        %972 = vmatpush1.msra.mxu0 0.0
        %973 = vmatprep.subr.mxu0 0.0
        %974 = vmatpush1.msra.mxu0 0.0
        %975 = vmatprep.subr.mxu0 0.0
        %976 = vmatpush1.msra.mxu0 0.0
        %977 = vmatprep.subr.mxu0 0.0
        %978 = vmatpush1.msra.mxu0 0.0
        %979 = vmatprep.subr.mxu0 0.0
        %980 = vmatpush1.msra.mxu0 0.0
        %981 = vmatprep.subr.mxu0 0.0
        %982 = vmatpush1.msra.mxu0 0.0
        %983 = vmatprep.subr.mxu0 0.0
        %984 = vmatpush1.msra.mxu0 0.0
        %985 = vmatprep.subr.mxu0 0.0
        %986 = vmatpush1.msra.mxu0 0.0
        %987 = vmatprep.subr.mxu0 0.0
        %988 = vmatpush1.msra.mxu0 0.0
        %989 = vmatprep.subr.mxu0 0.0
        %990 = vmatpush1.msra.mxu0 0.0
        %991 = vmatprep.subr.mxu0 0.0
        %992 = vmatpush1.msra.mxu0 0.0
        %993 = vmatprep.subr.mxu0 0.0
        %994 = vmatpush1.msra.mxu0 0.0
        %995 = vmatprep.subr.mxu0 0.0
        %996 = vmatpush1.msra.mxu0 0.0
        %997 = vmatprep.subr.mxu0 0.0
        %998 = vmatpush1.msra.mxu0 0.0
        %999 = vmatprep.subr.mxu0 0.0
        %1000 = vmatpush1.msra.mxu0 0.0
        %1001 = vmatprep.subr.mxu0 0.0
        %1002 = vmatpush1.msra.mxu0 0.0
        %1003 = vmatprep.mubr.f32.mxu0 0.0
        %v1004 = vand.u32 %v254, 4294901760
        %1005 = vmatmul.mubr.f32.gmra.mrb[0].mxu0 %v1004
        %v1006 = vpop.f32.mrb[0].mxu0
        %v1007 = vadd.f32 %v902, %v1006
        %v1008 = vpop.f32.mrb[0].mxu0
        %1009 = vmatprep.mubr.f32.mxu0 0.0
        %v1010 = vand.u32 %v255, 4294901760
        %1011 = vmatmul.mubr.f32.gmra.mrb[0].mxu0 %v1010
        %v1012 = vpop.f32.mrb[0].mxu0
        %v1013 = vadd.f32 %v908, %v1012
        %v1014 = vpop.f32.mrb[0].mxu0
        %1015 = vmatprep.mubr.f32.mxu0 0.0
        %v1016 = vand.u32 %v256, 4294901760
        %1017 = vmatmul.mubr.f32.gmra.mrb[0].mxu0 %v1016
        %v1018 = vpop.f32.mrb[0].mxu0
        %v1019 = vadd.f32 %v914, %v1018
        %v1020 = vpop.f32.mrb[0].mxu0
        %1021 = vmatprep.mubr.f32.mxu0 0.0
        %v1022 = vand.u32 %v257, 4294901760
        %1023 = vmatmul.mubr.f32.gmra.mrb[0].mxu0 %v1022
        %v1024 = vpop.f32.mrb[0].mxu0
        %v1025 = vadd.f32 %v920, %v1024
        %v1026 = vpop.f32.mrb[0].mxu0
        %1027 = vdwg.mxu0
        %1028 = vst [vmem:[%s159] sm:$0xff] %v1007
        %1029 = vst [vmem:[%s159 + $0x8] sm:$0xff] %v1013
        %1030 = vst [vmem:[%s159 + $0x10] sm:$0xff] %v1019
        %1031 = vst [vmem:[%s159 + $0x18] sm:$0xff] %v1025
        %s1032 = sand.u32 %s70, 1
        %s1033 = scalar_lea.sflag [#allocation4], %s1032
        %s1034 = sand.u32 %s70, 1
        %s1035 = smul.addr %s1034, 32
        %s1036 = scalar_lea.vmem [#allocation5], %s1035
        // Predicated region
        $region29: #{tpu_custom_call.1} parent=23 // pred_check
          %p1037 = pneg %p80
        $region30: #{tpu_custom_call.1} parent=23 // pred_check_branch
          %1039 = sbr.rel (%p1037) target = $region32
        $region31: #{tpu_custom_call.1} parent=23 // pred_region
          %s1040 = ssub.s32 0, %s23
          %s1041 = smul.u32 4, %s22
          %s1042 = ssub.s32 6, %s1041
          %p1043 = scmp.lt.s32.totalorder %s1042, 4
          %s1044 = scalar_select %p1043, %s1042, 4
          %s1045 = smul.u32 128, %s1044
          %s1047 = ssub.s32 512, %s1045
          %1048 = vsyncadd %s1033, %s1047
          %p1049 = scmp.ne.s32.totalorder 0, %s1045
          %s1050 = sadd.s32 %s1040, %s1041
          %s1051 = smul.addr %s1050, 128
          %s1052 = scalar_lea.hbm %s1, %s1051
          %s1053 = smul.u32 8, %s1044
          %s1054 = sshll.u32 %s1036, 4
          %s1055 = int_to_ptr.vmem [resolvable:$true] %s1054
          %s1056 = sshll.u32 %s1053, 4
          %1060 = dma.vmem_to_hbm [thread:$0]  (%p1049), %s1055, %s1056, %s1052, %s1033, 128, 128, 8
        $region32: #{tpu_custom_call.1} parent=23 // pred_fallthru
          _
      $region24: #{tpu_custom_call.1} parent=5 // pred_fallthru
        _
      %p1061 = scmp.le.s32.totalorder 2, %s13
      // Predicated region
      $region33: #{tpu_custom_call.1} parent=5 // pred_check
        %p1062 = pneg %p1061
      $region34: #{tpu_custom_call.1} parent=5 // pred_check_branch
        %1064 = sbr.rel (%p1062) target = $region36
      $region35: #{tpu_custom_call.1} parent=5 // pred_region
        %s1065 = ssub.s32 %s13, 2
        // Predicated region
        $region37: #{tpu_custom_call.1} parent=35 // pred_check
          %p1066 = pneg %p86
        $region38: #{tpu_custom_call.1} parent=35 // pred_check_branch
          %1068 = sbr.rel (%p1066) target = $region40
        $region39: #{tpu_custom_call.1} parent=35 // pred_region
          %s1069 = sand.u32 %s71, 1
          %s1070 = scalar_lea.sflag [#allocation4], %s1069
          %s1071 = sand.u32 %s71, 1
          %s1072 = smul.addr %s1071, 32
          %s1073 = scalar_lea.vmem [#allocation5], %s1072
          %1074 = dma.done %s1070, 512
        $region40: #{tpu_custom_call.1} parent=35 // pred_fallthru
          _
      $region36: #{tpu_custom_call.1} parent=5 // pred_fallthru
        _
    $region6: #{tpu_custom_call.1} parent=1 // loop_footer
      %s17 = sadd.s32 1, %s13
    $region7: #{tpu_custom_call.1} parent=1 // loop_footer_branch
      %12 = sbr.rel target = $region3
    $region8: #{tpu_custom_call.1} parent=1 // loop_exit
      _
    %1075 = vsyncpa [#allocation3], 1
    %s1076 = scalar_lea.sflag [#allocation3], 1
    %1077 = vsyncpa %s1076, 1
    %1078 = vsyncpa [#allocation4], 1
    %s1079 = scalar_lea.sflag [#allocation4], 1
    %1080 = vsyncpa %s1079, 1

</llo_original>
